<compile_context>
chip_gen: v7x
topology: tpu7x:2x2x1
jax: 0.10.0
libtpu: 0.0.40
codegen_flags: <defaults>
</compile_context>

<pallas_src>
import functools
import math

import jax
import jax.numpy as jnp
from jax import lax
from jax.experimental import pallas as pl
from jax.experimental.pallas import tpu as pltpu


# ------------------------------ fused kernel --------------------------------

def _mha_fused_kernel(*refs, n_heads, scale, causal, has_mask):
    if has_mask:
        (x_ref, wqkv_ref, bqkv_ref, wout_ref, bout_ref, mask_ref, o_ref) = refs
    else:
        (x_ref, wqkv_ref, bqkv_ref, wout_ref, bout_ref, o_ref) = refs
        mask_ref = None

    L = x_ref.shape[1]
    E = x_ref.shape[2]
    hd = E // n_heads

    x = x_ref[0]                                           # (L, E) bf16

    # Fused QKV projection: one MXU matmul, bf16 operands, f32 accumulation.
    qkv = jnp.dot(x, wqkv_ref[...], preferred_element_type=jnp.float32)
    qkv = qkv + bqkv_ref[...]                              # (L, 3E) f32

    if has_mask:
        add_mask = mask_ref[...]                           # (L, L) additive f32
    elif causal:
        row = lax.broadcasted_iota(jnp.int32, (L, L), 0)
        col = lax.broadcasted_iota(jnp.int32, (L, L), 1)
        add_mask = jnp.where(col > row, -jnp.inf, 0.0).astype(jnp.float32)
    else:
        add_mask = None

    heads_out = []
    for h in range(n_heads):                               # unrolled, H is small
        q_h = qkv[:, h * hd:(h + 1) * hd].astype(jnp.bfloat16)
        k_h = qkv[:, E + h * hd:E + (h + 1) * hd].astype(jnp.bfloat16)
        v_h = qkv[:, 2 * E + h * hd:2 * E + (h + 1) * hd].astype(jnp.bfloat16)

        # Contract the last dims directly — no transposed copy of K.
        s = lax.dot_general(q_h, k_h, (((1,), (1,)), ((), ())),
                            preferred_element_type=jnp.float32) * scale
        if add_mask is not None:
            s = s + add_mask

        # Softmax in f32 (v5e has no native bf16 VPU/EUP path).
        m = jnp.max(s, axis=-1, keepdims=True)
        p = jnp.exp(s - m)
        p = p * pl.reciprocal(jnp.sum(p, axis=-1, keepdims=True), approx=True)

        heads_out.append(jnp.dot(p.astype(jnp.bfloat16), v_h,
                                 preferred_element_type=jnp.float32))

    o = jnp.concatenate(heads_out, axis=-1)                # (L, E) f32

    out = jnp.dot(o.astype(jnp.bfloat16), wout_ref[...],
                  preferred_element_type=jnp.float32) + bout_ref[...]
    o_ref[0] = out.astype(o_ref.dtype)


# ------------------------------ wrapper --------------------------------------

def _fuse_projection_weights(p):
    # (x @ w_key + b_key) @ in_w_q + in_b_q  ==  x @ (w_key @ in_w_q) + b_eff
    wq = p["w_key"] @ p["in_w_q"]
    bq = p["b_key"] @ p["in_w_q"] + p["in_b_q"]
    wk = p["w_query"] @ p["in_w_k"]
    bk = p["b_query"] @ p["in_w_k"] + p["in_b_k"]
    wv = p["w_value"] @ p["in_w_v"]
    bv = p["b_value"] @ p["in_w_v"] + p["in_b_v"]
    w_qkv = jnp.concatenate([wq, wk, wv], axis=1)          # (E, 3E)
    b_qkv = jnp.concatenate([bq, bk, bv], axis=1)          # (1, 3E)
    return w_qkv, b_qkv


@functools.partial(jax.jit, static_argnames=("n_heads", "causal"))
def mha_layer_forward(x, params, *, n_heads, causal_mask=None, causal=False):
    L, N, E = x.shape
    hd = E // n_heads
    scale = 1.0 / math.sqrt(hd)

    # Algebraic fusion in f32, then cast MXU weights to bf16 (half the DMA).
    # In production this would be precomputed once at load time.
    w_qkv, b_qkv = _fuse_projection_weights(params)
    w_qkv_bf = w_qkv.astype(jnp.bfloat16)
    w_out_bf = params["out_w"].astype(jnp.bfloat16)
    b_out = params["out_b"]

    # Batch-first layout for a per-batch grid; input cast to bf16.
    x_b = jnp.transpose(x, (1, 0, 2)).astype(jnp.bfloat16)  # (N, L, E)

    has_mask = causal_mask is not None
    inputs = [x_b, w_qkv_bf, b_qkv, w_out_bf, b_out]
    in_specs = [
        pl.BlockSpec((1, L, E), lambda n: (n, 0, 0)),       # per-batch x block
        pl.BlockSpec((E, 3 * E), lambda n: (0, 0)),         # resident weights
        pl.BlockSpec((1, 3 * E), lambda n: (0, 0)),
        pl.BlockSpec((E, E), lambda n: (0, 0)),
        pl.BlockSpec((1, E), lambda n: (0, 0)),
    ]
    if has_mask:
        inputs.append(causal_mask.astype(jnp.float32))      # additive (L, L)
        in_specs.append(pl.BlockSpec((L, L), lambda n: (0, 0)))

    kern = functools.partial(_mha_fused_kernel, n_heads=n_heads, scale=scale,
                             causal=causal, has_mask=has_mask)

    out_b = pl.pallas_call(
        kern,
        out_shape=jax.ShapeDtypeStruct((N, L, E), jnp.float32),
        grid=(N,),
        in_specs=in_specs,
        out_specs=pl.BlockSpec((1, L, E), lambda n: (n, 0, 0)),
        compiler_params=pltpu.CompilerParams(
            dimension_semantics=("parallel",)),
    )(*inputs)

    return jnp.transpose(out_b, (1, 0, 2))                  # back to (L, N, E)


# ------------------------------ params ---------------------------------------

def init_params(key, d_model):
    ks = jax.random.split(key, 16)
    std = 1.0 / math.sqrt(d_model)

    def w(k):  # weights stored as (in, out), i.e. torch_weight.T
        return (std * jax.random.normal(k, (d_model, d_model))).astype(jnp.float32)

    def b(k):
        return (std * jax.random.normal(k, (1, d_model))).astype(jnp.float32)

    return {
        # outer W_key / W_query / W_value linears
        "w_key": w(ks[0]), "b_key": b(ks[1]),
        "w_query": w(ks[2]), "b_query": b(ks[3]),
        "w_value": w(ks[4]), "b_value": b(ks[5]),
        # nn.MultiheadAttention in_proj (split per q/k/v) and out_proj
        "in_w_q": w(ks[6]), "in_b_q": b(ks[7]),
        "in_w_k": w(ks[8]), "in_b_k": b(ks[9]),
        "in_w_v": w(ks[10]), "in_b_v": b(ks[11]),
        "out_w": w(ks[12]), "out_b": b(ks[13]),
    }


# ------------------------------ pure-JAX reference ---------------------------

def mha_layer_reference(x, p, n_heads, causal_mask=None, causal=False):
    L, N, E = x.shape
    hd = E // n_heads
    xf = x.reshape(L * N, E)
    lin = lambda a, W, b: a @ W + b
    K = lin(xf, p["w_key"], p["b_key"])
    Q = lin(xf, p["w_query"], p["b_query"])
    V = lin(xf, p["w_value"], p["b_value"])
    q = lin(K, p["in_w_q"], p["in_b_q"])
    k = lin(Q, p["in_w_k"], p["in_b_k"])
    v = lin(V, p["in_w_v"], p["in_b_v"])
    th = lambda t: t.reshape(L, N, n_heads, hd).transpose(1, 2, 0, 3).reshape(
        N * n_heads, L, hd)
    qh, kh, vh = th(q), th(k), th(v)
    s = jnp.einsum("bld,bsd->bls", qh, kh) / math.sqrt(hd)
    if causal:
        col = jnp.arange(L)[None, :]
        row = jnp.arange(L)[:, None]
        causal_mask = jnp.where(col > row, -jnp.inf, 0.0).astype(jnp.float32)
    if causal_mask is not None:
        s = s + causal_mask
    a = jax.nn.softmax(s, axis=-1)
    oh = jnp.einsum("bls,bsd->bld", a, vh)
    o = oh.reshape(N, n_heads, L, hd).transpose(2, 0, 1, 3).reshape(L * N, E)
    return lin(o, p["out_w"], p["out_b"]).reshape(L, N, E)


# ------------------------------------ main -----------------------------------

if __name__ == "__main__":
    seq_len, batch, d_model, n_heads = 8, 2, 32, 4
    key = jax.random.PRNGKey(0)
    kx, kp = jax.random.split(key)
    x = jax.random.normal(kx, (seq_len, batch, d_model), dtype=jnp.float32)
    params = init_params(kp, d_model)

    # Tolerances account for bf16 MXU operands (f32 accumulation) vs f32 ref.
    TOL = dict(atol=5e-2, rtol=5e-2)

    # 1) no mask
    out = jax.block_until_ready(mha_layer_forward(x, params, n_heads=n_heads))
    ref = mha_layer_reference(x, params, n_heads)
    assert out.shape == (seq_len, batch, d_model)
    assert jnp.allclose(out, ref, **TOL)

    # 2) causal mask generated in-kernel (no mask DMA)
    out_c = jax.block_until_ready(
        mha_layer_forward(x, params, n_heads=n_heads, causal=True))
    ref_c = mha_layer_reference(x, params, n_heads, causal=True)
    assert jnp.allclose(out_c, ref_c, **TOL)

    # 3) explicit additive attn_mask (module API)
    col = jnp.arange(seq_len)[None, :]
    row = jnp.arange(seq_len)[:, None]
    attn_mask = jnp.where(col > row, -jnp.inf, 0.0).astype(jnp.float32)
    out_m = jax.block_until_ready(
        mha_layer_forward(x, params, n_heads=n_heads, causal_mask=attn_mask))
    assert jnp.allclose(out_m, ref_c, **TOL)

    print("KERNEL_OK")
</pallas_src>

<mosaic_0001>
module attributes {stable_mosaic.version = 11 : i64} {
  func.func @_mha_fused_kernel(%arg0: i32, %arg1: memref<1x8x32xbf16, #tpu.memory_space<vmem>>, %arg2: memref<32x96xbf16, #tpu.memory_space<vmem>>, %arg3: memref<1x96xf32, #tpu.memory_space<vmem>>, %arg4: memref<32x32xbf16, #tpu.memory_space<vmem>>, %arg5: memref<1x32xf32, #tpu.memory_space<vmem>>, %arg6: memref<1x8x32xf32, #tpu.memory_space<vmem>>) attributes {dimension_semantics = [#tpu.dimension_semantics<parallel>], iteration_bounds = array<i64: 2>, scalar_prefetch = 0 : i64, scratch_operands = 0 : i64, tpu.core_type = #tpu.core_type<tc>, window_params = [{transform_indices = @transform_0, window_bounds = array<i64: 1, 8, 32>}, {pipeline_mode = #tpu.pipeline_mode<synchronous>, transform_indices = @transform_1, window_bounds = array<i64: 32, 96>}, {pipeline_mode = #tpu.pipeline_mode<synchronous>, transform_indices = @transform_2, window_bounds = array<i64: 1, 96>}, {pipeline_mode = #tpu.pipeline_mode<synchronous>, transform_indices = @transform_3, window_bounds = array<i64: 32, 32>}, {pipeline_mode = #tpu.pipeline_mode<synchronous>, transform_indices = @transform_4, window_bounds = array<i64: 1, 32>}, {transform_indices = @transform_5, window_bounds = array<i64: 1, 8, 32>}]} {
    %c0 = arith.constant 0 : index
    %c0_0 = arith.constant 0 : index
    %c0_1 = arith.constant 0 : index
    %0 = vector.load %arg1[%c0, %c0_0, %c0_1] : memref<1x8x32xbf16, #tpu.memory_space<vmem>>, vector<1x8x32xbf16>
    %1 = vector.shape_cast %0 : vector<1x8x32xbf16> to vector<8x32xbf16>
    %c0_2 = arith.constant 0 : index
    %c0_3 = arith.constant 0 : index
    %2 = vector.load %arg2[%c0_2, %c0_3] : memref<32x96xbf16, #tpu.memory_space<vmem>>, vector<32x96xbf16>
    %cst = arith.constant dense<0.000000e+00> : vector<8x96xf32>
    %3 = tpu.matmul %1, %2, %cst {dimension_numbers = #tpu.dot_dimension_numbers<[1], [0], [0], [1], [0, 0, 1, 1], [], []>} : vector<8x32xbf16>, vector<32x96xbf16>, vector<8x96xf32> -> vector<8x96xf32>
    %c0_4 = arith.constant 0 : index
    %c0_5 = arith.constant 0 : index
    %4 = vector.load %arg3[%c0_4, %c0_5] : memref<1x96xf32, #tpu.memory_space<vmem>>, vector<1x96xf32>
    %5 = vector.broadcast %4 : vector<1x96xf32> to vector<8x96xf32>
    %6 = arith.addf %3, %5 : vector<8x96xf32>
    %7 = vector.extract_strided_slice %6 {offsets = [0, 0], sizes = [8, 8], strides = [1, 1]} : vector<8x96xf32> to vector<8x8xf32>
    %8 = arith.truncf %7 : vector<8x8xf32> to vector<8x8xbf16>
    %9 = vector.extract_strided_slice %6 {offsets = [0, 32], sizes = [8, 8], strides = [1, 1]} : vector<8x96xf32> to vector<8x8xf32>
    %10 = arith.truncf %9 : vector<8x8xf32> to vector<8x8xbf16>
    %11 = vector.extract_strided_slice %6 {offsets = [0, 64], sizes = [8, 8], strides = [1, 1]} : vector<8x96xf32> to vector<8x8xf32>
    %12 = arith.truncf %11 : vector<8x8xf32> to vector<8x8xbf16>
    %cst_6 = arith.constant dense<0.000000e+00> : vector<8x8xf32>
    %13 = tpu.matmul %8, %10, %cst_6 {dimension_numbers = #tpu.dot_dimension_numbers<[1], [1], [0], [0], [0, 0, 1, 0], [], []>} : vector<8x8xbf16>, vector<8x8xbf16>, vector<8x8xf32> -> vector<8x8xf32>
    %cst_7 = arith.constant 0.353553385 : f32
    %14 = vector.broadcast %cst_7 : f32 to vector<8x8xf32>
    %15 = arith.mulf %13, %14 : vector<8x8xf32>
    %cst_8 = arith.constant dense<0xFF800000> : vector<8xf32>
    %16 = vector.multi_reduction <maximumf>, %15, %cst_8 [1] : vector<8x8xf32> to vector<8xf32>
    %17 = vector.shape_cast %16 : vector<8xf32> to vector<8x1xf32>
    %18 = vector.broadcast %17 : vector<8x1xf32> to vector<8x8xf32>
    %19 = arith.subf %15, %18 : vector<8x8xf32>
    %20 = math.exp %19 : vector<8x8xf32>
    %cst_9 = arith.constant dense<0.000000e+00> : vector<8xf32>
    %21 = vector.multi_reduction <add>, %20, %cst_9 [1] : vector<8x8xf32> to vector<8xf32>
    %22 = vector.shape_cast %21 : vector<8xf32> to vector<8x1xf32>
    %23 = tpu.reciprocal %22 {approx = true} : vector<8x1xf32> -> vector<8x1xf32>
    %24 = vector.broadcast %23 : vector<8x1xf32> to vector<8x8xf32>
    %25 = arith.mulf %20, %24 : vector<8x8xf32>
    %26 = arith.truncf %25 : vector<8x8xf32> to vector<8x8xbf16>
    %cst_10 = arith.constant dense<0.000000e+00> : vector<8x8xf32>
    %27 = tpu.matmul %26, %12, %cst_10 {dimension_numbers = #tpu.dot_dimension_numbers<[1], [0], [0], [1], [0, 0, 1, 1], [], []>} : vector<8x8xbf16>, vector<8x8xbf16>, vector<8x8xf32> -> vector<8x8xf32>
    %28 = vector.extract_strided_slice %6 {offsets = [0, 8], sizes = [8, 8], strides = [1, 1]} : vector<8x96xf32> to vector<8x8xf32>
    %29 = arith.truncf %28 : vector<8x8xf32> to vector<8x8xbf16>
    %30 = vector.extract_strided_slice %6 {offsets = [0, 40], sizes = [8, 8], strides = [1, 1]} : vector<8x96xf32> to vector<8x8xf32>
    %31 = arith.truncf %30 : vector<8x8xf32> to vector<8x8xbf16>
    %32 = vector.extract_strided_slice %6 {offsets = [0, 72], sizes = [8, 8], strides = [1, 1]} : vector<8x96xf32> to vector<8x8xf32>
    %33 = arith.truncf %32 : vector<8x8xf32> to vector<8x8xbf16>
    %cst_11 = arith.constant dense<0.000000e+00> : vector<8x8xf32>
    %34 = tpu.matmul %29, %31, %cst_11 {dimension_numbers = #tpu.dot_dimension_numbers<[1], [1], [0], [0], [0, 0, 1, 0], [], []>} : vector<8x8xbf16>, vector<8x8xbf16>, vector<8x8xf32> -> vector<8x8xf32>
    %cst_12 = arith.constant 0.353553385 : f32
    %35 = vector.broadcast %cst_12 : f32 to vector<8x8xf32>
    %36 = arith.mulf %34, %35 : vector<8x8xf32>
    %cst_13 = arith.constant dense<0xFF800000> : vector<8xf32>
    %37 = vector.multi_reduction <maximumf>, %36, %cst_13 [1] : vector<8x8xf32> to vector<8xf32>
    %38 = vector.shape_cast %37 : vector<8xf32> to vector<8x1xf32>
    %39 = vector.broadcast %38 : vector<8x1xf32> to vector<8x8xf32>
    %40 = arith.subf %36, %39 : vector<8x8xf32>
    %41 = math.exp %40 : vector<8x8xf32>
    %cst_14 = arith.constant dense<0.000000e+00> : vector<8xf32>
    %42 = vector.multi_reduction <add>, %41, %cst_14 [1] : vector<8x8xf32> to vector<8xf32>
    %43 = vector.shape_cast %42 : vector<8xf32> to vector<8x1xf32>
    %44 = tpu.reciprocal %43 {approx = true} : vector<8x1xf32> -> vector<8x1xf32>
    %45 = vector.broadcast %44 : vector<8x1xf32> to vector<8x8xf32>
    %46 = arith.mulf %41, %45 : vector<8x8xf32>
    %47 = arith.truncf %46 : vector<8x8xf32> to vector<8x8xbf16>
    %cst_15 = arith.constant dense<0.000000e+00> : vector<8x8xf32>
    %48 = tpu.matmul %47, %33, %cst_15 {dimension_numbers = #tpu.dot_dimension_numbers<[1], [0], [0], [1], [0, 0, 1, 1], [], []>} : vector<8x8xbf16>, vector<8x8xbf16>, vector<8x8xf32> -> vector<8x8xf32>
    %49 = vector.extract_strided_slice %6 {offsets = [0, 16], sizes = [8, 8], strides = [1, 1]} : vector<8x96xf32> to vector<8x8xf32>
    %50 = arith.truncf %49 : vector<8x8xf32> to vector<8x8xbf16>
    %51 = vector.extract_strided_slice %6 {offsets = [0, 48], sizes = [8, 8], strides = [1, 1]} : vector<8x96xf32> to vector<8x8xf32>
    %52 = arith.truncf %51 : vector<8x8xf32> to vector<8x8xbf16>
    %53 = vector.extract_strided_slice %6 {offsets = [0, 80], sizes = [8, 8], strides = [1, 1]} : vector<8x96xf32> to vector<8x8xf32>
    %54 = arith.truncf %53 : vector<8x8xf32> to vector<8x8xbf16>
    %cst_16 = arith.constant dense<0.000000e+00> : vector<8x8xf32>
    %55 = tpu.matmul %50, %52, %cst_16 {dimension_numbers = #tpu.dot_dimension_numbers<[1], [1], [0], [0], [0, 0, 1, 0], [], []>} : vector<8x8xbf16>, vector<8x8xbf16>, vector<8x8xf32> -> vector<8x8xf32>
    %cst_17 = arith.constant 0.353553385 : f32
    %56 = vector.broadcast %cst_17 : f32 to vector<8x8xf32>
    %57 = arith.mulf %55, %56 : vector<8x8xf32>
    %cst_18 = arith.constant dense<0xFF800000> : vector<8xf32>
    %58 = vector.multi_reduction <maximumf>, %57, %cst_18 [1] : vector<8x8xf32> to vector<8xf32>
    %59 = vector.shape_cast %58 : vector<8xf32> to vector<8x1xf32>
    %60 = vector.broadcast %59 : vector<8x1xf32> to vector<8x8xf32>
    %61 = arith.subf %57, %60 : vector<8x8xf32>
    %62 = math.exp %61 : vector<8x8xf32>
    %cst_19 = arith.constant dense<0.000000e+00> : vector<8xf32>
    %63 = vector.multi_reduction <add>, %62, %cst_19 [1] : vector<8x8xf32> to vector<8xf32>
    %64 = vector.shape_cast %63 : vector<8xf32> to vector<8x1xf32>
    %65 = tpu.reciprocal %64 {approx = true} : vector<8x1xf32> -> vector<8x1xf32>
    %66 = vector.broadcast %65 : vector<8x1xf32> to vector<8x8xf32>
    %67 = arith.mulf %62, %66 : vector<8x8xf32>
    %68 = arith.truncf %67 : vector<8x8xf32> to vector<8x8xbf16>
    %cst_20 = arith.constant dense<0.000000e+00> : vector<8x8xf32>
    %69 = tpu.matmul %68, %54, %cst_20 {dimension_numbers = #tpu.dot_dimension_numbers<[1], [0], [0], [1], [0, 0, 1, 1], [], []>} : vector<8x8xbf16>, vector<8x8xbf16>, vector<8x8xf32> -> vector<8x8xf32>
    %70 = vector.extract_strided_slice %6 {offsets = [0, 24], sizes = [8, 8], strides = [1, 1]} : vector<8x96xf32> to vector<8x8xf32>
    %71 = arith.truncf %70 : vector<8x8xf32> to vector<8x8xbf16>
    %72 = vector.extract_strided_slice %6 {offsets = [0, 56], sizes = [8, 8], strides = [1, 1]} : vector<8x96xf32> to vector<8x8xf32>
    %73 = arith.truncf %72 : vector<8x8xf32> to vector<8x8xbf16>
    %74 = vector.extract_strided_slice %6 {offsets = [0, 88], sizes = [8, 8], strides = [1, 1]} : vector<8x96xf32> to vector<8x8xf32>
    %75 = arith.truncf %74 : vector<8x8xf32> to vector<8x8xbf16>
    %cst_21 = arith.constant dense<0.000000e+00> : vector<8x8xf32>
    %76 = tpu.matmul %71, %73, %cst_21 {dimension_numbers = #tpu.dot_dimension_numbers<[1], [1], [0], [0], [0, 0, 1, 0], [], []>} : vector<8x8xbf16>, vector<8x8xbf16>, vector<8x8xf32> -> vector<8x8xf32>
    %cst_22 = arith.constant 0.353553385 : f32
    %77 = vector.broadcast %cst_22 : f32 to vector<8x8xf32>
    %78 = arith.mulf %76, %77 : vector<8x8xf32>
    %cst_23 = arith.constant dense<0xFF800000> : vector<8xf32>
    %79 = vector.multi_reduction <maximumf>, %78, %cst_23 [1] : vector<8x8xf32> to vector<8xf32>
    %80 = vector.shape_cast %79 : vector<8xf32> to vector<8x1xf32>
    %81 = vector.broadcast %80 : vector<8x1xf32> to vector<8x8xf32>
    %82 = arith.subf %78, %81 : vector<8x8xf32>
    %83 = math.exp %82 : vector<8x8xf32>
    %cst_24 = arith.constant dense<0.000000e+00> : vector<8xf32>
    %84 = vector.multi_reduction <add>, %83, %cst_24 [1] : vector<8x8xf32> to vector<8xf32>
    %85 = vector.shape_cast %84 : vector<8xf32> to vector<8x1xf32>
    %86 = tpu.reciprocal %85 {approx = true} : vector<8x1xf32> -> vector<8x1xf32>
    %87 = vector.broadcast %86 : vector<8x1xf32> to vector<8x8xf32>
    %88 = arith.mulf %83, %87 : vector<8x8xf32>
    %89 = arith.truncf %88 : vector<8x8xf32> to vector<8x8xbf16>
    %cst_25 = arith.constant dense<0.000000e+00> : vector<8x8xf32>
    %90 = tpu.matmul %89, %75, %cst_25 {dimension_numbers = #tpu.dot_dimension_numbers<[1], [0], [0], [1], [0, 0, 1, 1], [], []>} : vector<8x8xbf16>, vector<8x8xbf16>, vector<8x8xf32> -> vector<8x8xf32>
    %91 = tpu.concatenate %27, %48, %69, %90 in 1 : vector<8x8xf32>, vector<8x8xf32>, vector<8x8xf32>, vector<8x8xf32> -> vector<8x32xf32>
    %92 = arith.truncf %91 : vector<8x32xf32> to vector<8x32xbf16>
    %c0_26 = arith.constant 0 : index
    %c0_27 = arith.constant 0 : index
    %93 = vector.load %arg4[%c0_26, %c0_27] : memref<32x32xbf16, #tpu.memory_space<vmem>>, vector<32x32xbf16>
    %cst_28 = arith.constant dense<0.000000e+00> : vector<8x32xf32>
    %94 = tpu.matmul %92, %93, %cst_28 {dimension_numbers = #tpu.dot_dimension_numbers<[1], [0], [0], [1], [0, 0, 1, 1], [], []>} : vector<8x32xbf16>, vector<32x32xbf16>, vector<8x32xf32> -> vector<8x32xf32>
    %c0_29 = arith.constant 0 : index
    %c0_30 = arith.constant 0 : index
    %95 = vector.load %arg5[%c0_29, %c0_30] : memref<1x32xf32, #tpu.memory_space<vmem>>, vector<1x32xf32>
    %96 = vector.broadcast %95 : vector<1x32xf32> to vector<8x32xf32>
    %97 = arith.addf %94, %96 : vector<8x32xf32>
    %c0_31 = arith.constant 0 : index
    %c0_32 = arith.constant 0 : index
    %c0_33 = arith.constant 0 : index
    %98 = vector.load %arg6[%c0_31, %c0_32, %c0_33] : memref<1x8x32xf32, #tpu.memory_space<vmem>>, vector<1x8x32xf32>
    %99 = vector.shape_cast %98 : vector<1x8x32xf32> to vector<8x32xf32>
    %100 = vector.shape_cast %97 : vector<8x32xf32> to vector<1x8x32xf32>
    tpu.vector_store %arg6[%c0_31, %c0_32, %c0_33], %100 {strides = array<i32>} : memref<1x8x32xf32, #tpu.memory_space<vmem>>, vector<1x8x32xf32>,
    return
  }
  func.func @transform_0(%arg0: i32) -> (i32, i32, i32) {
    %c0_i32 = arith.constant 0 : i32
    %c0_i32_0 = arith.constant 0 : i32
    %c0_i32_1 = arith.constant 0 : i32
    return %arg0, %c0_i32, %c0_i32_0 : i32, i32, i32
  }
  func.func @transform_1(%arg0: i32) -> (i32, i32) {
    %c0_i32 = arith.constant 0 : i32
    %c0_i32_0 = arith.constant 0 : i32
    %c0_i32_1 = arith.constant 0 : i32
    return %c0_i32, %c0_i32_0 : i32, i32
  }
  func.func @transform_2(%arg0: i32) -> (i32, i32) {
    %c0_i32 = arith.constant 0 : i32
    %c0_i32_0 = arith.constant 0 : i32
    %c0_i32_1 = arith.constant 0 : i32
    return %c0_i32, %c0_i32_0 : i32, i32
  }
  func.func @transform_3(%arg0: i32) -> (i32, i32) {
    %c0_i32 = arith.constant 0 : i32
    %c0_i32_0 = arith.constant 0 : i32
    %c0_i32_1 = arith.constant 0 : i32
    return %c0_i32, %c0_i32_0 : i32, i32
  }
  func.func @transform_4(%arg0: i32) -> (i32, i32) {
    %c0_i32 = arith.constant 0 : i32
    %c0_i32_0 = arith.constant 0 : i32
    %c0_i32_1 = arith.constant 0 : i32
    return %c0_i32, %c0_i32_0 : i32, i32
  }
  func.func @transform_5(%arg0: i32) -> (i32, i32, i32) {
    %c0_i32 = arith.constant 0 : i32
    %c0_i32_0 = arith.constant 0 : i32
    %c0_i32_1 = arith.constant 0 : i32
    return %arg0, %c0_i32, %c0_i32_0 : i32, i32, i32
  }
}

</mosaic_0001>

<llo_original>
// kernel: mha_layer_forward.1
$region0: #{mha_layer_forward.1}
  #allocation0 [shape = 'u32[]', space=smem, size = 0x4, offset = 0x4, fixed_abs, tag = 'smem constant byte address 0x4 - core index']
  #allocation1 [shape = 'u32[144,128]{1,0:T(1,128)}', space=vmem, size = 0x12000, scoped, tag = 'internal scratch']
  %s0 = inlined_call_operand.vmem [shape: bf16[2,8,32], index: 0, kind: input, shape index: {}]
  %s1 = inlined_call_operand.vmem [shape: bf16[32,96], index: 1, kind: input, shape index: {}]
  %s2 = inlined_call_operand.vmem [shape: f32[1,96], index: 2, kind: input, shape index: {}]
  %s3 = inlined_call_operand.vmem [shape: bf16[32,32], index: 3, kind: input, shape index: {}]
  %s4 = inlined_call_operand.vmem [shape: f32[1,32], index: 4, kind: input, shape index: {}]
  %s5 = inlined_call_operand.vmem [shape: f32[2,8,32], index: 5, kind: output, shape index: {}]
  %s6 = sld [smem:[#allocation0]]
  $region53: #{mha_layer_forward.1} parent=0
    _
  %s8 = ssub.s32 1, %s6
  %s9 = scalar_select 0, %s8, %s6
  loop: start=0, step=1, limit=4
  $region2: #{mha_layer_forward.1} parent=0 // loop_pre_header
    _
  $region3: #{mha_layer_forward.1} parent=0 // loop_header
    %s11 = sphi 0, %s15
    %p12 = scmp.ge.s32.totalorder %s11, 4
    %s21 = sphi 0, %s23
    %s24 = sphi 0, %s21
    %s25 = sphi 0, %s24
    %s41 = sphi 0, %s25
    %s45 = sphi 0, %s45
    %s47 = sphi 0, %s45
    %s48 = sphi 0, %s47
    %s62 = sphi 0, %s48
    %s66 = sphi 0, %s66
    %s68 = sphi 0, %s66
    %s69 = sphi 0, %s68
    %s83 = sphi 0, %s69
    %s87 = sphi 0, %s87
    %s89 = sphi 0, %s87
    %s90 = sphi 0, %s89
    %s104 = sphi 0, %s90
    %s108 = sphi 0, %s108
    %s110 = sphi 0, %s108
    %s111 = sphi 0, %s110
    %s125 = sphi 0, %s111
    %s131 = sphi 0, %s133
    %s134 = sphi 0, %s131
    %s135 = sphi 0, %s134
    %s151 = sphi 0, %s135
  $region4: #{mha_layer_forward.1} parent=0 // loop_header_branch
    %14 = sbr.rel (%p12) target = $region8
  $region5: #{mha_layer_forward.1} parent=0 // loop_body
    %s16 = ssub.s32 %s11, 1
    %s17 = ssub.s32 %s11, 2
    %s18 = sadd.s32 %s11, 1
    %s19 = ssub.s32 %s11, %s18
    %p20 = scmp.eq.s32.totalorder %s19, 0
    %s22 = sadd.s32 %s21, 1
    %s23 = scalar_select %p20, %s21, %s22
    %p26 = pneg %p20
    %p27 = scmp.eq.s32.totalorder %s11, 1
    %p28 = por %p26, %p27
    %p29 = scmp.ne.s32.totalorder %s21, %s24
    %p30 = scmp.eq.s32.totalorder %s11, 0
    %p31 = por %p29, %p30
    %p32 = scmp.ne.s32.totalorder %s21, %s24
    %p33 = scmp.eq.s32.totalorder %s16, 1
    %p34 = por %p32, %p33
    %p35 = scmp.ne.s32.totalorder %s24, %s25
    %p36 = scmp.eq.s32.totalorder %s16, 0
    %p37 = por %p35, %p36
    %p38 = scmp.ne.s32.totalorder %s24, %s25
    %p39 = scmp.eq.s32.totalorder %s17, 1
    %p40 = por %p38, %p39
    %p42 = scmp.ne.s32.totalorder %s25, %s41
    %p43 = scmp.eq.s32.totalorder %s17, 0
    %p44 = por %p42, %p43
    %s46 = sadd.s32 %s45, 1
    %p49 = scmp.eq.s32.totalorder %s11, 1
    %p50 = scmp.ne.s32.totalorder %s45, %s47
    %p51 = scmp.eq.s32.totalorder %s11, 0
    %p52 = por %p50, %p51
    %p53 = scmp.ne.s32.totalorder %s45, %s47
    %p54 = scmp.eq.s32.totalorder %s16, 1
    %p55 = por %p53, %p54
    %p56 = scmp.ne.s32.totalorder %s47, %s48
    %p57 = scmp.eq.s32.totalorder %s16, 0
    %p58 = por %p56, %p57
    %p59 = scmp.ne.s32.totalorder %s47, %s48
    %p60 = scmp.eq.s32.totalorder %s17, 1
    %p61 = por %p59, %p60
    %p63 = scmp.ne.s32.totalorder %s48, %s62
    %p64 = scmp.eq.s32.totalorder %s17, 0
    %p65 = por %p63, %p64
    %s67 = sadd.s32 %s66, 1
    %p70 = scmp.eq.s32.totalorder %s11, 1
    %p71 = scmp.ne.s32.totalorder %s66, %s68
    %p72 = scmp.eq.s32.totalorder %s11, 0
    %p73 = por %p71, %p72
    %p74 = scmp.ne.s32.totalorder %s66, %s68
    %p75 = scmp.eq.s32.totalorder %s16, 1
    %p76 = por %p74, %p75
    %p77 = scmp.ne.s32.totalorder %s68, %s69
    %p78 = scmp.eq.s32.totalorder %s16, 0
    %p79 = por %p77, %p78
    %p80 = scmp.ne.s32.totalorder %s68, %s69
    %p81 = scmp.eq.s32.totalorder %s17, 1
    %p82 = por %p80, %p81
    %p84 = scmp.ne.s32.totalorder %s69, %s83
    %p85 = scmp.eq.s32.totalorder %s17, 0
    %p86 = por %p84, %p85
    %s88 = sadd.s32 %s87, 1
    %p91 = scmp.eq.s32.totalorder %s11, 1
    %p92 = scmp.ne.s32.totalorder %s87, %s89
    %p93 = scmp.eq.s32.totalorder %s11, 0
    %p94 = por %p92, %p93
    %p95 = scmp.ne.s32.totalorder %s87, %s89
    %p96 = scmp.eq.s32.totalorder %s16, 1
    %p97 = por %p95, %p96
    %p98 = scmp.ne.s32.totalorder %s89, %s90
    %p99 = scmp.eq.s32.totalorder %s16, 0
    %p100 = por %p98, %p99
    %p101 = scmp.ne.s32.totalorder %s89, %s90
    %p102 = scmp.eq.s32.totalorder %s17, 1
    %p103 = por %p101, %p102
    %p105 = scmp.ne.s32.totalorder %s90, %s104
    %p106 = scmp.eq.s32.totalorder %s17, 0
    %p107 = por %p105, %p106
    %s109 = sadd.s32 %s108, 1
    %p112 = scmp.eq.s32.totalorder %s11, 1
    %p113 = scmp.ne.s32.totalorder %s108, %s110
    %p114 = scmp.eq.s32.totalorder %s11, 0
    %p115 = por %p113, %p114
    %p116 = scmp.ne.s32.totalorder %s108, %s110
    %p117 = scmp.eq.s32.totalorder %s16, 1
    %p118 = por %p116, %p117
    %p119 = scmp.ne.s32.totalorder %s110, %s111
    %p120 = scmp.eq.s32.totalorder %s16, 0
    %p121 = por %p119, %p120
    %p122 = scmp.ne.s32.totalorder %s110, %s111
    %p123 = scmp.eq.s32.totalorder %s17, 1
    %p124 = por %p122, %p123
    %p126 = scmp.ne.s32.totalorder %s111, %s125
    %p127 = scmp.eq.s32.totalorder %s17, 0
    %p128 = por %p126, %p127
    %s129 = ssub.s32 %s11, %s18
    %p130 = scmp.eq.s32.totalorder %s129, 0
    %s132 = sadd.s32 %s131, 1
    %s133 = scalar_select %p130, %s131, %s132
    %p136 = pneg %p130
    %p137 = scmp.eq.s32.totalorder %s11, 1
    %p138 = por %p136, %p137
    %p139 = scmp.ne.s32.totalorder %s131, %s134
    %p140 = scmp.eq.s32.totalorder %s11, 0
    %p141 = por %p139, %p140
    %p142 = scmp.ne.s32.totalorder %s131, %s134
    %p143 = scmp.eq.s32.totalorder %s16, 1
    %p144 = por %p142, %p143
    %p145 = scmp.ne.s32.totalorder %s134, %s135
    %p146 = scmp.eq.s32.totalorder %s16, 0
    %p147 = por %p145, %p146
    %p148 = scmp.ne.s32.totalorder %s134, %s135
    %p149 = scmp.eq.s32.totalorder %s17, 1
    %p150 = por %p148, %p149
    %p152 = scmp.ne.s32.totalorder %s135, %s151
    %p153 = scmp.eq.s32.totalorder %s17, 0
    %p154 = por %p152, %p153
    %p155 = scmp.le.s32.totalorder 1, %s11
    %p156 = scmp.lt.s32.totalorder %s11, 3
    %p157 = pnand %p155, %p156
    %p158 = pneg %p157
    // Predicated region
    $region9: #{mha_layer_forward.1} parent=5 // pred_check
      _
    $region10: #{mha_layer_forward.1} parent=5 // pred_check_branch
      %160 = sbr.rel (%p157) target = $region12
    $region11: #{mha_layer_forward.1} parent=5 // pred_region
      %s161 = ssub.s32 %s11, 1
      // Predicated region
      $region13: #{mha_layer_forward.1} parent=11 // pred_check
        %p162 = pneg %p58
      $region14: #{mha_layer_forward.1} parent=11 // pred_check_branch
        %164 = sbr.rel (%p162) target = $region16
      $region15: #{mha_layer_forward.1} parent=11 // pred_region
        _
      $region16: #{mha_layer_forward.1} parent=11 // pred_fallthru
        _
      // Predicated region
      $region17: #{mha_layer_forward.1} parent=11 // pred_check
        %p165 = pneg %p79
      $region18: #{mha_layer_forward.1} parent=11 // pred_check_branch
        %167 = sbr.rel (%p165) target = $region20
      $region19: #{mha_layer_forward.1} parent=11 // pred_region
        _
      $region20: #{mha_layer_forward.1} parent=11 // pred_fallthru
        _
      // Predicated region
      $region21: #{mha_layer_forward.1} parent=11 // pred_check
        %p168 = pneg %p100
      $region22: #{mha_layer_forward.1} parent=11 // pred_check_branch
        %170 = sbr.rel (%p168) target = $region24
      $region23: #{mha_layer_forward.1} parent=11 // pred_region
        _
      $region24: #{mha_layer_forward.1} parent=11 // pred_fallthru
        _
      // Predicated region
      $region25: #{mha_layer_forward.1} parent=11 // pred_check
        %p171 = pneg %p121
      $region26: #{mha_layer_forward.1} parent=11 // pred_check_branch
        %173 = sbr.rel (%p171) target = $region28
      $region27: #{mha_layer_forward.1} parent=11 // pred_region
        _
      $region28: #{mha_layer_forward.1} parent=11 // pred_fallthru
        _
    $region12: #{mha_layer_forward.1} parent=5 // pred_fallthru
      _
    %p174 = scmp.lt.s32.totalorder %s11, 2
    // Predicated region
    $region29: #{mha_layer_forward.1} parent=5 // pred_check
      %p175 = pneg %p174
    $region30: #{mha_layer_forward.1} parent=5 // pred_check_branch
      %177 = sbr.rel (%p175) target = $region32
    $region31: #{mha_layer_forward.1} parent=5 // pred_region
      // Predicated region
      $region33: #{mha_layer_forward.1} parent=31 // pred_check
        %p178 = pneg %p31
      $region34: #{mha_layer_forward.1} parent=31 // pred_check_branch
        %180 = sbr.rel (%p178) target = $region36
      $region35: #{mha_layer_forward.1} parent=31 // pred_region
        %p181 = scmp.lt.s32.totalorder %s11, 1
        %s182 = scalar_select %p181, %s11, 1
        %s183 = smul.addr %s182, 4
        %s184 = scalar_lea.vmem %s0, %s183
      $region36: #{mha_layer_forward.1} parent=31 // pred_fallthru
        _
    $region32: #{mha_layer_forward.1} parent=5 // pred_fallthru
      _
    %p185 = scmp.le.s32.totalorder 1, %s11
    %p186 = scmp.lt.s32.totalorder %s11, 3
    %p187 = pnand %p185, %p186
    %p188 = pneg %p187
    // Predicated region
    $region37: #{mha_layer_forward.1} parent=5 // pred_check
      _
    $region38: #{mha_layer_forward.1} parent=5 // pred_check_branch
      %190 = sbr.rel (%p187) target = $region40
    $region39: #{mha_layer_forward.1} parent=5 // pred_region
      %s191 = ssub.s32 %s11, 1
      %p192 = scmp.lt.s32.totalorder %s16, 1
      %s193 = scalar_select %p192, %s16, 1
      %s194 = smul.addr %s193, 4
      %s195 = scalar_lea.vmem %s0, %s194
      %p196 = pneg %p37
      %p197 = pneg %p34
      %p198 = pneg %p58
      %p199 = pneg %p55
      %p200 = pneg %p79
      %p201 = pneg %p76
      %p202 = pneg %p100
      %p203 = pneg %p97
      %p204 = pneg %p121
      %p205 = pneg %p118
      %p206 = pneg %p147
      %p207 = pneg %p144
      %p208 = scmp.lt.s32.totalorder %s16, 1
      %s209 = scalar_select %p208, %s16, 1
      %s210 = smul.addr %s209, 8
      %s211 = scalar_lea.vmem %s5, %s210
      %p212 = scmp.lt.s32.totalorder %s16, 1
      %s213 = scalar_select %p212, %s16, 1
      %s214 = smul.addr %s213, 4
      %s215 = scalar_lea.vmem %s0, %s214
      %p216 = scmp.lt.s32.totalorder %s16, 1
      %s217 = scalar_select %p216, %s16, 1
      %s218 = smul.addr %s217, 8
      %s219 = scalar_lea.vmem %s5, %s218
      %v221 = vld [vmem:[%s215] sm:$0xf]
      %v222 = vld [vmem:[%s1] sm:$0xf]
      %v223 = vld [vmem:[%s1 + $0x4] sm:$0xf]
      %v224 = vld [vmem:[%s1 + $0x8] sm:$0xf]
      %v225 = vld [vmem:[%s1 + $0xc] sm:$0xf]
      %v226 = vld [vmem:[%s2] sm:$0x1]
      %v228 = vlaneseq
      %v229 = vshrl.u32 %v228, 7
      %v230 = vsub.s32 0, %v229
      %v231 = vrot.slane %v226, %v230
      %v237 = vunpack.c.l.b16 %v222
      %v238 = vunpack.c.l.b16 %v223
      %v239 = vunpack.c.l.b16 %v224
      %v240 = vunpack.c.l.b16 %v225
      %v241 = vpack.c.b16 %v238, %v237
      %v242 = vpack.c.b16 %v240, %v239
      %vm245 = vcmask 261120
      %v247 = vsel %vm245, %v221, 0
      %249 = vmatprep.subr.bf16.mxu0 0
      %250 = vmatpush1.bf16.msra.mxu0 %v241
      %251 = vmatprep.subr.bf16.mxu0 0
      %252 = vmatpush1.bf16.msra.mxu0 %v242
      %253 = vmatprep.subr.bf16.mxu0 0
      %254 = vmatpush1.bf16.msra.mxu0 0
      %255 = vmatprep.subr.bf16.mxu0 0
      %256 = vmatpush1.bf16.msra.mxu0 0
      %257 = vmatprep.subr.bf16.mxu0 0
      %258 = vmatpush1.bf16.msra.mxu0 0
      %259 = vmatprep.subr.bf16.mxu0 0
      %260 = vmatpush1.bf16.msra.mxu0 0
      %261 = vmatprep.subr.bf16.mxu0 0
      %262 = vmatpush1.bf16.msra.mxu0 0
      %263 = vmatprep.subr.bf16.mxu0 0
      %264 = vmatpush1.bf16.msra.mxu0 0
      %265 = vmatprep.subr.bf16.mxu0 0
      %266 = vmatpush1.bf16.msra.mxu0 0
      %267 = vmatprep.subr.bf16.mxu0 0
      %268 = vmatpush1.bf16.msra.mxu0 0
      %269 = vmatprep.subr.bf16.mxu0 0
      %270 = vmatpush1.bf16.msra.mxu0 0
      %271 = vmatprep.subr.bf16.mxu0 0
      %272 = vmatpush1.bf16.msra.mxu0 0
      %273 = vmatprep.subr.bf16.mxu0 0
      %274 = vmatpush1.bf16.msra.mxu0 0
      %275 = vmatprep.subr.bf16.mxu0 0
      %276 = vmatpush1.bf16.msra.mxu0 0
      %277 = vmatprep.subr.bf16.mxu0 0
      %278 = vmatpush1.bf16.msra.mxu0 0
      %279 = vmatprep.subr.bf16.mxu0 0
      %280 = vmatpush1.bf16.msra.mxu0 0
      %281 = vmatprep.mubr.bf16.mxu0 0
      %282 = vmatmul.mubr.bf16.gmra.mrb[0].mxu0 %v247
      %v283 = vpop.f32.mrb[0].mxu0
      %v284 = vadd.f32 %v231, %v283
      %v285 = vpop.f32.mrb[0].mxu0
      %v286 = vpop.f32.mrb[0].mxu0
      %v287 = vpop.f32.mrb[0].mxu0
      %288 = vdwg.mxu0
      %v289 = vpack.c.bf16 %v284, %v284
      %291 = vrot.lane.b32.xlu0 %v289, 96
      %v292 = vpop.permute.xlu0 %291
      %vm293 = vcmask 64512
      %v295 = vsel %vm293, %v289, 0
      %v298 = vsel %vm293, %v292, 0
      %300 = vmatprep.subr.bf16.mxu0 0
      %301 = vmatpush1.bf16.xpose.msra.mxu0 %v298
      %302 = vmatprep.subr.bf16.mxu0 0
      %303 = vmatpush1.bf16.xpose.msra.mxu0 0
      %304 = vmatprep.subr.bf16.mxu0 0
      %305 = vmatpush1.bf16.xpose.msra.mxu0 0
      %306 = vmatprep.subr.bf16.mxu0 0
      %307 = vmatpush1.bf16.xpose.msra.mxu0 0
      %308 = vmatprep.subr.bf16.mxu0 0
      %309 = vmatpush1.bf16.xpose.msra.mxu0 0
      %310 = vmatprep.subr.bf16.mxu0 0
      %311 = vmatpush1.bf16.xpose.msra.mxu0 0
      %312 = vmatprep.subr.bf16.mxu0 0
      %313 = vmatpush1.bf16.xpose.msra.mxu0 0
      %314 = vmatprep.subr.bf16.mxu0 0
      %315 = vmatpush1.bf16.xpose.msra.mxu0 0
      %316 = vmatprep.subr.bf16.mxu0 0
      %317 = vmatpush1.bf16.xpose.msra.mxu0 0
      %318 = vmatprep.subr.bf16.mxu0 0
      %319 = vmatpush1.bf16.xpose.msra.mxu0 0
      %320 = vmatprep.subr.bf16.mxu0 0
      %321 = vmatpush1.bf16.xpose.msra.mxu0 0
      %322 = vmatprep.subr.bf16.mxu0 0
      %323 = vmatpush1.bf16.xpose.msra.mxu0 0
      %324 = vmatprep.subr.bf16.mxu0 0
      %325 = vmatpush1.bf16.xpose.msra.mxu0 0
      %326 = vmatprep.subr.bf16.mxu0 0
      %327 = vmatpush1.bf16.xpose.msra.mxu0 0
      %328 = vmatprep.subr.bf16.mxu0 0
      %329 = vmatpush1.bf16.xpose.msra.mxu0 0
      %330 = vmatprep.subr.bf16.mxu0 0
      %331 = vmatpush1.bf16.xpose.msra.mxu0 0
      %332 = vmatprep.mubr.bf16.mxu0 0
      %333 = vmatmul.mubr.bf16.gmra.mrb[0].mxu0 %v295
      %v334 = vpop.f32.mrb[0].mxu0
      %v335 = vadd.f32 0.0, %v334
      %v336 = vpop.f32.mrb[0].mxu0
      %v337 = vpop.f32.mrb[0].mxu0
      %v338 = vpop.f32.mrb[0].mxu0
      %339 = vdwg.mxu0
      %v340 = vmul.f32 %v335, 0.35355338
      %v341 = vsel %vm293, %v340, -inf
      %342 = vmax.xlane.f32.xlu0 %v341
      %v343 = vpop.xlane.xlu0 %342
      %v344 = vsub.f32 %v340, %v343
      %v345 = vmul.f32 %v344, 1.442695
      %v346 = vpow.pop %v345
      %v347 = vsel %vm293, %v346, 0.0
      %348 = vadd.xlane.f32.xlu0 %v347
      %v349 = vpop.xlane.xlu0 %348
      %v350 = vrcp.pop %v349
      %v351 = vmul.f32 %v346, %v350
      %v352 = vpack.c.bf16 %v351, %v351
      %353 = vrot.lane.b32.xlu0 %v289, 64
      %v354 = vpop.permute.xlu0 %353
      %v356 = vsel %vm293, %v352, 0
      %vm358 = vcmask 1043456
      %v360 = vsel %vm358, %v354, 0
      %362 = vmatprep.subr.bf16.mxu0 0
      %363 = vmatpush1.bf16.msra.mxu0 %v360
      %364 = vmatprep.subr.bf16.mxu0 0
      %365 = vmatpush1.bf16.msra.mxu0 0
      %366 = vmatprep.subr.bf16.mxu0 0
      %367 = vmatpush1.bf16.msra.mxu0 0
      %368 = vmatprep.subr.bf16.mxu0 0
      %369 = vmatpush1.bf16.msra.mxu0 0
      %370 = vmatprep.subr.bf16.mxu0 0
      %371 = vmatpush1.bf16.msra.mxu0 0
      %372 = vmatprep.subr.bf16.mxu0 0
      %373 = vmatpush1.bf16.msra.mxu0 0
      %374 = vmatprep.subr.bf16.mxu0 0
      %375 = vmatpush1.bf16.msra.mxu0 0
      %376 = vmatprep.subr.bf16.mxu0 0
      %377 = vmatpush1.bf16.msra.mxu0 0
      %378 = vmatprep.subr.bf16.mxu0 0
      %379 = vmatpush1.bf16.msra.mxu0 0
      %380 = vmatprep.subr.bf16.mxu0 0
      %381 = vmatpush1.bf16.msra.mxu0 0
      %382 = vmatprep.subr.bf16.mxu0 0
      %383 = vmatpush1.bf16.msra.mxu0 0
      %384 = vmatprep.subr.bf16.mxu0 0
      %385 = vmatpush1.bf16.msra.mxu0 0
      %386 = vmatprep.subr.bf16.mxu0 0
      %387 = vmatpush1.bf16.msra.mxu0 0
      %388 = vmatprep.subr.bf16.mxu0 0
      %389 = vmatpush1.bf16.msra.mxu0 0
      %390 = vmatprep.subr.bf16.mxu0 0
      %391 = vmatpush1.bf16.msra.mxu0 0
      %392 = vmatprep.subr.bf16.mxu0 0
      %393 = vmatpush1.bf16.msra.mxu0 0
      %394 = vmatprep.mubr.bf16.mxu0 0
      %395 = vmatmul.mubr.bf16.gmra.mrb[0].mxu0 %v356
      %v396 = vpop.f32.mrb[0].mxu0
      %v397 = vadd.f32 0.0, %v396
      %v398 = vpop.f32.mrb[0].mxu0
      %v399 = vpop.f32.mrb[0].mxu0
      %v400 = vpop.f32.mrb[0].mxu0
      %401 = vdwg.mxu0
      %402 = vrot.lane.b32.xlu0 %v289, 120
      %v403 = vpop.permute.xlu0 %402
      %404 = vrot.lane.b32.xlu0 %v289, 88
      %v405 = vpop.permute.xlu0 %404
      %v407 = vsel %vm293, %v403, 0
      %v410 = vsel %vm293, %v405, 0
      %412 = vmatprep.subr.bf16.mxu0 0
      %413 = vmatpush1.bf16.xpose.msra.mxu0 %v410
      %414 = vmatprep.subr.bf16.mxu0 0
      %415 = vmatpush1.bf16.xpose.msra.mxu0 0
      %416 = vmatprep.subr.bf16.mxu0 0
      %417 = vmatpush1.bf16.xpose.msra.mxu0 0
      %418 = vmatprep.subr.bf16.mxu0 0
      %419 = vmatpush1.bf16.xpose.msra.mxu0 0
      %420 = vmatprep.subr.bf16.mxu0 0
      %421 = vmatpush1.bf16.xpose.msra.mxu0 0
      %422 = vmatprep.subr.bf16.mxu0 0
      %423 = vmatpush1.bf16.xpose.msra.mxu0 0
      %424 = vmatprep.subr.bf16.mxu0 0
      %425 = vmatpush1.bf16.xpose.msra.mxu0 0
      %426 = vmatprep.subr.bf16.mxu0 0
      %427 = vmatpush1.bf16.xpose.msra.mxu0 0
      %428 = vmatprep.subr.bf16.mxu0 0
      %429 = vmatpush1.bf16.xpose.msra.mxu0 0
      %430 = vmatprep.subr.bf16.mxu0 0
      %431 = vmatpush1.bf16.xpose.msra.mxu0 0
      %432 = vmatprep.subr.bf16.mxu0 0
      %433 = vmatpush1.bf16.xpose.msra.mxu0 0
      %434 = vmatprep.subr.bf16.mxu0 0
      %435 = vmatpush1.bf16.xpose.msra.mxu0 0
      %436 = vmatprep.subr.bf16.mxu0 0
      %437 = vmatpush1.bf16.xpose.msra.mxu0 0
      %438 = vmatprep.subr.bf16.mxu0 0
      %439 = vmatpush1.bf16.xpose.msra.mxu0 0
      %440 = vmatprep.subr.bf16.mxu0 0
      %441 = vmatpush1.bf16.xpose.msra.mxu0 0
      %442 = vmatprep.subr.bf16.mxu0 0
      %443 = vmatpush1.bf16.xpose.msra.mxu0 0
      %444 = vmatprep.mubr.bf16.mxu0 0
      %445 = vmatmul.mubr.bf16.gmra.mrb[0].mxu0 %v407
      %v446 = vpop.f32.mrb[0].mxu0
      %v447 = vadd.f32 0.0, %v446
      %v448 = vpop.f32.mrb[0].mxu0
      %v449 = vpop.f32.mrb[0].mxu0
      %v450 = vpop.f32.mrb[0].mxu0
      %451 = vdwg.mxu0
      %v452 = vmul.f32 %v447, 0.35355338
      %v453 = vsel %vm293, %v452, -inf
      %454 = vmax.xlane.f32.xlu0 %v453
      %v455 = vpop.xlane.xlu0 %454
      %v456 = vsub.f32 %v452, %v455
      %v457 = vmul.f32 %v456, 1.442695
      %v458 = vpow.pop %v457
      %v459 = vsel %vm293, %v458, 0.0
      %460 = vadd.xlane.f32.xlu0 %v459
      %v461 = vpop.xlane.xlu0 %460
      %v462 = vrcp.pop %v461
      %v463 = vmul.f32 %v458, %v462
      %v464 = vpack.c.bf16 %v463, %v463
      %465 = vrot.lane.b32.xlu0 %v289, 56
      %v466 = vpop.permute.xlu0 %465
      %v468 = vsel %vm293, %v464, 0
      %v471 = vsel %vm358, %v466, 0
      %473 = vmatprep.subr.bf16.mxu0 0
      %474 = vmatpush1.bf16.msra.mxu0 %v471
      %475 = vmatprep.subr.bf16.mxu0 0
      %476 = vmatpush1.bf16.msra.mxu0 0
      %477 = vmatprep.subr.bf16.mxu0 0
      %478 = vmatpush1.bf16.msra.mxu0 0
      %479 = vmatprep.subr.bf16.mxu0 0
      %480 = vmatpush1.bf16.msra.mxu0 0
      %481 = vmatprep.subr.bf16.mxu0 0
      %482 = vmatpush1.bf16.msra.mxu0 0
      %483 = vmatprep.subr.bf16.mxu0 0
      %484 = vmatpush1.bf16.msra.mxu0 0
      %485 = vmatprep.subr.bf16.mxu0 0
      %486 = vmatpush1.bf16.msra.mxu0 0
      %487 = vmatprep.subr.bf16.mxu0 0
      %488 = vmatpush1.bf16.msra.mxu0 0
      %489 = vmatprep.subr.bf16.mxu0 0
      %490 = vmatpush1.bf16.msra.mxu0 0
      %491 = vmatprep.subr.bf16.mxu0 0
      %492 = vmatpush1.bf16.msra.mxu0 0
      %493 = vmatprep.subr.bf16.mxu0 0
      %494 = vmatpush1.bf16.msra.mxu0 0
      %495 = vmatprep.subr.bf16.mxu0 0
      %496 = vmatpush1.bf16.msra.mxu0 0
      %497 = vmatprep.subr.bf16.mxu0 0
      %498 = vmatpush1.bf16.msra.mxu0 0
      %499 = vmatprep.subr.bf16.mxu0 0
      %500 = vmatpush1.bf16.msra.mxu0 0
      %501 = vmatprep.subr.bf16.mxu0 0
      %502 = vmatpush1.bf16.msra.mxu0 0
      %503 = vmatprep.subr.bf16.mxu0 0
      %504 = vmatpush1.bf16.msra.mxu0 0
      %505 = vmatprep.mubr.bf16.mxu0 0
      %506 = vmatmul.mubr.bf16.gmra.mrb[0].mxu0 %v468
      %v507 = vpop.f32.mrb[0].mxu0
      %v508 = vadd.f32 0.0, %v507
      %v509 = vpop.f32.mrb[0].mxu0
      %v510 = vpop.f32.mrb[0].mxu0
      %v511 = vpop.f32.mrb[0].mxu0
      %512 = vdwg.mxu0
      %513 = vrot.lane.b32.xlu0 %v289, 112
      %v514 = vpop.permute.xlu0 %513
      %515 = vrot.lane.b32.xlu0 %v289, 80
      %v516 = vpop.permute.xlu0 %515
      %v518 = vsel %vm293, %v514, 0
      %v521 = vsel %vm293, %v516, 0
      %523 = vmatprep.subr.bf16.mxu0 0
      %524 = vmatpush1.bf16.xpose.msra.mxu0 %v521
      %525 = vmatprep.subr.bf16.mxu0 0
      %526 = vmatpush1.bf16.xpose.msra.mxu0 0
      %527 = vmatprep.subr.bf16.mxu0 0
      %528 = vmatpush1.bf16.xpose.msra.mxu0 0
      %529 = vmatprep.subr.bf16.mxu0 0
      %530 = vmatpush1.bf16.xpose.msra.mxu0 0
      %531 = vmatprep.subr.bf16.mxu0 0
      %532 = vmatpush1.bf16.xpose.msra.mxu0 0
      %533 = vmatprep.subr.bf16.mxu0 0
      %534 = vmatpush1.bf16.xpose.msra.mxu0 0
      %535 = vmatprep.subr.bf16.mxu0 0
      %536 = vmatpush1.bf16.xpose.msra.mxu0 0
      %537 = vmatprep.subr.bf16.mxu0 0
      %538 = vmatpush1.bf16.xpose.msra.mxu0 0
      %539 = vmatprep.subr.bf16.mxu0 0
      %540 = vmatpush1.bf16.xpose.msra.mxu0 0
      %541 = vmatprep.subr.bf16.mxu0 0
      %542 = vmatpush1.bf16.xpose.msra.mxu0 0
      %543 = vmatprep.subr.bf16.mxu0 0
      %544 = vmatpush1.bf16.xpose.msra.mxu0 0
      %545 = vmatprep.subr.bf16.mxu0 0
      %546 = vmatpush1.bf16.xpose.msra.mxu0 0
      %547 = vmatprep.subr.bf16.mxu0 0
      %548 = vmatpush1.bf16.xpose.msra.mxu0 0
      %549 = vmatprep.subr.bf16.mxu0 0
      %550 = vmatpush1.bf16.xpose.msra.mxu0 0
      %551 = vmatprep.subr.bf16.mxu0 0
      %552 = vmatpush1.bf16.xpose.msra.mxu0 0
      %553 = vmatprep.subr.bf16.mxu0 0
      %554 = vmatpush1.bf16.xpose.msra.mxu0 0
      %555 = vmatprep.mubr.bf16.mxu0 0
      %556 = vmatmul.mubr.bf16.gmra.mrb[0].mxu0 %v518
      %v557 = vpop.f32.mrb[0].mxu0
      %v558 = vadd.f32 0.0, %v557
      %v559 = vpop.f32.mrb[0].mxu0
      %v560 = vpop.f32.mrb[0].mxu0
      %v561 = vpop.f32.mrb[0].mxu0
      %562 = vdwg.mxu0
      %v563 = vmul.f32 %v558, 0.35355338
      %v564 = vsel %vm293, %v563, -inf
      %565 = vmax.xlane.f32.xlu0 %v564
      %v566 = vpop.xlane.xlu0 %565
      %v567 = vsub.f32 %v563, %v566
      %v568 = vmul.f32 %v567, 1.442695
      %v569 = vpow.pop %v568
      %v570 = vsel %vm293, %v569, 0.0
      %571 = vadd.xlane.f32.xlu0 %v570
      %v572 = vpop.xlane.xlu0 %571
      %v573 = vrcp.pop %v572
      %v574 = vmul.f32 %v569, %v573
      %v575 = vpack.c.bf16 %v574, %v574
      %576 = vrot.lane.b32.xlu0 %v289, 48
      %v577 = vpop.permute.xlu0 %576
      %v579 = vsel %vm293, %v575, 0
      %v582 = vsel %vm358, %v577, 0
      %584 = vmatprep.subr.bf16.mxu0 0
      %585 = vmatpush1.bf16.msra.mxu0 %v582
      %586 = vmatprep.subr.bf16.mxu0 0
      %587 = vmatpush1.bf16.msra.mxu0 0
      %588 = vmatprep.subr.bf16.mxu0 0
      %589 = vmatpush1.bf16.msra.mxu0 0
      %590 = vmatprep.subr.bf16.mxu0 0
      %591 = vmatpush1.bf16.msra.mxu0 0
      %592 = vmatprep.subr.bf16.mxu0 0
      %593 = vmatpush1.bf16.msra.mxu0 0
      %594 = vmatprep.subr.bf16.mxu0 0
      %595 = vmatpush1.bf16.msra.mxu0 0
      %596 = vmatprep.subr.bf16.mxu0 0
      %597 = vmatpush1.bf16.msra.mxu0 0
      %598 = vmatprep.subr.bf16.mxu0 0
      %599 = vmatpush1.bf16.msra.mxu0 0
      %600 = vmatprep.subr.bf16.mxu0 0
      %601 = vmatpush1.bf16.msra.mxu0 0
      %602 = vmatprep.subr.bf16.mxu0 0
      %603 = vmatpush1.bf16.msra.mxu0 0
      %604 = vmatprep.subr.bf16.mxu0 0
      %605 = vmatpush1.bf16.msra.mxu0 0
      %606 = vmatprep.subr.bf16.mxu0 0
      %607 = vmatpush1.bf16.msra.mxu0 0
      %608 = vmatprep.subr.bf16.mxu0 0
      %609 = vmatpush1.bf16.msra.mxu0 0
      %610 = vmatprep.subr.bf16.mxu0 0
      %611 = vmatpush1.bf16.msra.mxu0 0
      %612 = vmatprep.subr.bf16.mxu0 0
      %613 = vmatpush1.bf16.msra.mxu0 0
      %614 = vmatprep.subr.bf16.mxu0 0
      %615 = vmatpush1.bf16.msra.mxu0 0
      %616 = vmatprep.mubr.bf16.mxu0 0
      %617 = vmatmul.mubr.bf16.gmra.mrb[0].mxu0 %v579
      %v618 = vpop.f32.mrb[0].mxu0
      %v619 = vadd.f32 0.0, %v618
      %v620 = vpop.f32.mrb[0].mxu0
      %v621 = vpop.f32.mrb[0].mxu0
      %v622 = vpop.f32.mrb[0].mxu0
      %623 = vdwg.mxu0
      %624 = vrot.lane.b32.xlu0 %v289, 104
      %v625 = vpop.permute.xlu0 %624
      %626 = vrot.lane.b32.xlu0 %v289, 72
      %v627 = vpop.permute.xlu0 %626
      %v629 = vsel %vm293, %v625, 0
      %v632 = vsel %vm293, %v627, 0
      %634 = vmatprep.subr.bf16.mxu0 0
      %635 = vmatpush1.bf16.xpose.msra.mxu0 %v632
      %636 = vmatprep.subr.bf16.mxu0 0
      %637 = vmatpush1.bf16.xpose.msra.mxu0 0
      %638 = vmatprep.subr.bf16.mxu0 0
      %639 = vmatpush1.bf16.xpose.msra.mxu0 0
      %640 = vmatprep.subr.bf16.mxu0 0
      %641 = vmatpush1.bf16.xpose.msra.mxu0 0
      %642 = vmatprep.subr.bf16.mxu0 0
      %643 = vmatpush1.bf16.xpose.msra.mxu0 0
      %644 = vmatprep.subr.bf16.mxu0 0
      %645 = vmatpush1.bf16.xpose.msra.mxu0 0
      %646 = vmatprep.subr.bf16.mxu0 0
      %647 = vmatpush1.bf16.xpose.msra.mxu0 0
      %648 = vmatprep.subr.bf16.mxu0 0
      %649 = vmatpush1.bf16.xpose.msra.mxu0 0
      %650 = vmatprep.subr.bf16.mxu0 0
      %651 = vmatpush1.bf16.xpose.msra.mxu0 0
      %652 = vmatprep.subr.bf16.mxu0 0
      %653 = vmatpush1.bf16.xpose.msra.mxu0 0
      %654 = vmatprep.subr.bf16.mxu0 0
      %655 = vmatpush1.bf16.xpose.msra.mxu0 0
      %656 = vmatprep.subr.bf16.mxu0 0
      %657 = vmatpush1.bf16.xpose.msra.mxu0 0
      %658 = vmatprep.subr.bf16.mxu0 0
      %659 = vmatpush1.bf16.xpose.msra.mxu0 0
      %660 = vmatprep.subr.bf16.mxu0 0
      %661 = vmatpush1.bf16.xpose.msra.mxu0 0
      %662 = vmatprep.subr.bf16.mxu0 0
      %663 = vmatpush1.bf16.xpose.msra.mxu0 0
      %664 = vmatprep.subr.bf16.mxu0 0
      %665 = vmatpush1.bf16.xpose.msra.mxu0 0
      %666 = vmatprep.mubr.bf16.mxu0 0
      %667 = vmatmul.mubr.bf16.gmra.mrb[0].mxu0 %v629
      %v668 = vpop.f32.mrb[0].mxu0
      %v669 = vadd.f32 0.0, %v668
      %v670 = vpop.f32.mrb[0].mxu0
      %v671 = vpop.f32.mrb[0].mxu0
      %v672 = vpop.f32.mrb[0].mxu0
      %673 = vdwg.mxu0
      %v674 = vmul.f32 %v669, 0.35355338
      %v675 = vsel %vm293, %v674, -inf
      %676 = vmax.xlane.f32.xlu0 %v675
      %v677 = vpop.xlane.xlu0 %676
      %v678 = vsub.f32 %v674, %v677
      %v679 = vmul.f32 %v678, 1.442695
      %v680 = vpow.pop %v679
      %v681 = vsel %vm293, %v680, 0.0
      %682 = vadd.xlane.f32.xlu0 %v681
      %v683 = vpop.xlane.xlu0 %682
      %v684 = vrcp.pop %v683
      %v685 = vmul.f32 %v680, %v684
      %v686 = vpack.c.bf16 %v685, %v685
      %687 = vrot.lane.b32.xlu0 %v289, 40
      %v688 = vpop.permute.xlu0 %687
      %v690 = vsel %vm293, %v686, 0
      %v693 = vsel %vm358, %v688, 0
      %695 = vmatprep.subr.bf16.mxu0 0
      %696 = vmatpush1.bf16.msra.mxu0 %v693
      %697 = vmatprep.subr.bf16.mxu0 0
      %698 = vmatpush1.bf16.msra.mxu0 0
      %699 = vmatprep.subr.bf16.mxu0 0
      %700 = vmatpush1.bf16.msra.mxu0 0
      %701 = vmatprep.subr.bf16.mxu0 0
      %702 = vmatpush1.bf16.msra.mxu0 0
      %703 = vmatprep.subr.bf16.mxu0 0
      %704 = vmatpush1.bf16.msra.mxu0 0
      %705 = vmatprep.subr.bf16.mxu0 0
      %706 = vmatpush1.bf16.msra.mxu0 0
      %707 = vmatprep.subr.bf16.mxu0 0
      %708 = vmatpush1.bf16.msra.mxu0 0
      %709 = vmatprep.subr.bf16.mxu0 0
      %710 = vmatpush1.bf16.msra.mxu0 0
      %711 = vmatprep.subr.bf16.mxu0 0
      %712 = vmatpush1.bf16.msra.mxu0 0
      %713 = vmatprep.subr.bf16.mxu0 0
      %714 = vmatpush1.bf16.msra.mxu0 0
      %715 = vmatprep.subr.bf16.mxu0 0
      %716 = vmatpush1.bf16.msra.mxu0 0
      %717 = vmatprep.subr.bf16.mxu0 0
      %718 = vmatpush1.bf16.msra.mxu0 0
      %719 = vmatprep.subr.bf16.mxu0 0
      %720 = vmatpush1.bf16.msra.mxu0 0
      %721 = vmatprep.subr.bf16.mxu0 0
      %722 = vmatpush1.bf16.msra.mxu0 0
      %723 = vmatprep.subr.bf16.mxu0 0
      %724 = vmatpush1.bf16.msra.mxu0 0
      %725 = vmatprep.subr.bf16.mxu0 0
      %726 = vmatpush1.bf16.msra.mxu0 0
      %727 = vmatprep.mubr.bf16.mxu0 0
      %728 = vmatmul.mubr.bf16.gmra.mrb[0].mxu0 %v690
      %v729 = vpop.f32.mrb[0].mxu0
      %v730 = vadd.f32 0.0, %v729
      %v731 = vpop.f32.mrb[0].mxu0
      %v732 = vpop.f32.mrb[0].mxu0
      %v733 = vpop.f32.mrb[0].mxu0
      %734 = vdwg.mxu0
      %736 = vrot.lane.b32.xlu0 %v508, 8
      %v737 = vpop.permute.xlu0 %736
      %740 = vrot.lane.b32.xlu0 %v619, 16
      %v741 = vpop.permute.xlu0 %740
      %744 = vrot.lane.b32.xlu0 %v730, 24
      %v745 = vpop.permute.xlu0 %744
      %v747 = vsel %vm293, %v397, %v737
      %vm748 = vcmask 130048
      %v749 = vsel %vm748, %v747, %v741
      %vm750 = vcmask 195584
      %v751 = vsel %vm750, %v749, %v745
      %v752 = vpack.c.bf16 %v751, %v751
      %v753 = vld [vmem:[%s3] sm:$0xf]
      %v754 = vld [vmem:[%s3 + $0x4] sm:$0xf]
      %v755 = vld [vmem:[%s3 + $0x8] sm:$0xf]
      %v756 = vld [vmem:[%s3 + $0xc] sm:$0xf]
      %v757 = vld [vmem:[%s4] sm:$0x1]
      %v759 = vlaneseq
      %v760 = vshrl.u32 %v759, 7
      %v761 = vsub.s32 0, %v760
      %v762 = vrot.slane %v757, %v761
      %v768 = vunpack.c.l.b16 %v753
      %v769 = vunpack.c.l.b16 %v754
      %v770 = vunpack.c.l.b16 %v755
      %v771 = vunpack.c.l.b16 %v756
      %v772 = vpack.c.b16 %v769, %v768
      %v773 = vpack.c.b16 %v771, %v770
      %v777 = vsel %vm245, %v752, 0
      %779 = vmatprep.subr.bf16.mxu0 0
      %780 = vmatpush1.bf16.msra.mxu0 %v772
      %781 = vmatprep.subr.bf16.mxu0 0
      %782 = vmatpush1.bf16.msra.mxu0 %v773
      %783 = vmatprep.subr.bf16.mxu0 0
      %784 = vmatpush1.bf16.msra.mxu0 0
      %785 = vmatprep.subr.bf16.mxu0 0
      %786 = vmatpush1.bf16.msra.mxu0 0
      %787 = vmatprep.subr.bf16.mxu0 0
      %788 = vmatpush1.bf16.msra.mxu0 0
      %789 = vmatprep.subr.bf16.mxu0 0
      %790 = vmatpush1.bf16.msra.mxu0 0
      %791 = vmatprep.subr.bf16.mxu0 0
      %792 = vmatpush1.bf16.msra.mxu0 0
      %793 = vmatprep.subr.bf16.mxu0 0
      %794 = vmatpush1.bf16.msra.mxu0 0
      %795 = vmatprep.subr.bf16.mxu0 0
      %796 = vmatpush1.bf16.msra.mxu0 0
      %797 = vmatprep.subr.bf16.mxu0 0
      %798 = vmatpush1.bf16.msra.mxu0 0
      %799 = vmatprep.subr.bf16.mxu0 0
      %800 = vmatpush1.bf16.msra.mxu0 0
      %801 = vmatprep.subr.bf16.mxu0 0
      %802 = vmatpush1.bf16.msra.mxu0 0
      %803 = vmatprep.subr.bf16.mxu0 0
      %804 = vmatpush1.bf16.msra.mxu0 0
      %805 = vmatprep.subr.bf16.mxu0 0
      %806 = vmatpush1.bf16.msra.mxu0 0
      %807 = vmatprep.subr.bf16.mxu0 0
      %808 = vmatpush1.bf16.msra.mxu0 0
      %809 = vmatprep.subr.bf16.mxu0 0
      %810 = vmatpush1.bf16.msra.mxu0 0
      %811 = vmatprep.mubr.bf16.mxu0 0
      %812 = vmatmul.mubr.bf16.gmra.mrb[0].mxu0 %v777
      %v813 = vpop.f32.mrb[0].mxu0
      %v814 = vadd.f32 %v762, %v813
      %v815 = vpop.f32.mrb[0].mxu0
      %v816 = vpop.f32.mrb[0].mxu0
      %v817 = vpop.f32.mrb[0].mxu0
      %818 = vdwg.mxu0
      %819 = vst.msk [vmem:[%s219] sm:$0xff] %vm245, %v814
      %p820 = scmp.lt.s32.totalorder %s16, 1
      %s821 = scalar_select %p820, %s16, 1
      %s822 = smul.addr %s821, 8
      %s823 = scalar_lea.vmem %s5, %s822
      // Predicated region
      $region41: #{mha_layer_forward.1} parent=39 // pred_check
        %p824 = pneg %p144
      $region42: #{mha_layer_forward.1} parent=39 // pred_check_branch
        %826 = sbr.rel (%p824) target = $region44
      $region43: #{mha_layer_forward.1} parent=39 // pred_region
        _
      $region44: #{mha_layer_forward.1} parent=39 // pred_fallthru
        _
    $region40: #{mha_layer_forward.1} parent=5 // pred_fallthru
      _
    %p827 = scmp.le.s32.totalorder 2, %s11
    // Predicated region
    $region45: #{mha_layer_forward.1} parent=5 // pred_check
      %p828 = pneg %p827
    $region46: #{mha_layer_forward.1} parent=5 // pred_check_branch
      %830 = sbr.rel (%p828) target = $region48
    $region47: #{mha_layer_forward.1} parent=5 // pred_region
      %s831 = ssub.s32 %s11, 2
      // Predicated region
      $region49: #{mha_layer_forward.1} parent=47 // pred_check
        %p832 = pneg %p150
      $region50: #{mha_layer_forward.1} parent=47 // pred_check_branch
        %834 = sbr.rel (%p832) target = $region52
      $region51: #{mha_layer_forward.1} parent=47 // pred_region
        %p835 = scmp.lt.s32.totalorder %s17, 1
        %s836 = scalar_select %p835, %s17, 1
        %s837 = smul.addr %s836, 8
        %s838 = scalar_lea.vmem %s5, %s837
      $region52: #{mha_layer_forward.1} parent=47 // pred_fallthru
        _
    $region48: #{mha_layer_forward.1} parent=5 // pred_fallthru
      _
  $region6: #{mha_layer_forward.1} parent=0 // loop_footer
    %s15 = sadd.s32 1, %s11
  $region7: #{mha_layer_forward.1} parent=0 // loop_footer_branch
    %10 = sbr.rel target = $region3
  $region8: #{mha_layer_forward.1} parent=0 // loop_exit
    _

</llo_original>
